<compile_context>
chip_gen: v6e
topology: v6e:2x2x1
jax: 0.10.0
libtpu: 0.0.40
codegen_flags: <defaults>
</compile_context>

<pallas_src>
import functools

import jax
import jax.numpy as jnp
from jax.experimental import pallas as pl
from jax.experimental.pallas import tpu as pltpu


def _dense_relu_kernel(x_ref, w_ref, b_ref, o_ref):
    # MXU matmul (bf16 operands, f32 accumulation), then bias + ReLU on the VPU.
    acc = jnp.dot(x_ref[...], w_ref[...], preferred_element_type=jnp.float32)
    acc = acc + b_ref[...]          # (block_m, block_n) + (1, block_n) broadcast
    acc = jnp.maximum(acc, 0.0)     # ReLU
    o_ref[...] = acc.astype(o_ref.dtype)


def _round_up(x, m):
    return (x + m - 1) // m * m


@functools.partial(jax.jit, static_argnames=("block_m", "block_n", "use_bf16"))
def dense_relu(x, w, b, *, block_m=None, block_n=None, use_bf16=True):
    """y = relu(x @ w.T + b), matching torch.nn.Linear + ReLU.

    x : (M, K) float32  — batch of feature vectors
    w : (N, K) float32  — PyTorch nn.Linear weight layout (out_features, in_features)
    b : (N,)   float32  — bias
    """
    M, K = x.shape
    N, _ = w.shape
    out_dtype = x.dtype

    # --- operand dtype: bf16 on the MXU, f32 accumulate ---------------------
    mm_dtype = jnp.bfloat16 if use_bf16 else x.dtype
    x_mm = x.astype(mm_dtype)
    w_t = jnp.transpose(w).astype(mm_dtype)          # (K, N): (M,K)@(K,N) layout
    b_row = b.reshape(1, N).astype(jnp.float32)

    # --- tile sizes ----------------------------------------------------------
    # Lane-dense output: block_n is a multiple of 128 (and N is padded to it).
    if block_n is None:
        block_n = min(512, _round_up(N, 128))
    block_n = _round_up(block_n, 128)
    N_pad = _round_up(N, block_n)

    # M tiles: multiple of 8 sublanes; 256 is the measured sweet spot for the
    # bandwidth-bound regime, and >1 M-block lets v7x shard across both TCs.
    if block_m is None:
        block_m = min(256, _round_up(M, 8))
    block_m = _round_up(block_m, 8)
    M_pad = _round_up(M, block_m)

    # TODO(synk): for K beyond a few thousand, add a K reduction grid axis
    # ("arbitrary", last) with an f32 VMEM accumulator instead of full-K tiles.

    # --- pad to exact multiples (padding sliced off at the end) --------------
    x_p = jnp.pad(x_mm, ((0, M_pad - M), (0, 0)))
    w_p = jnp.pad(w_t, ((0, 0), (0, N_pad - N)))
    b_p = jnp.pad(b_row, ((0, 0), (0, N_pad - N)))

    grid = (M_pad // block_m, N_pad // block_n)

    # --- explicit VMEM budget (double-buffered tiles + headroom) -------------
    in_item = jnp.dtype(mm_dtype).itemsize
    out_item = jnp.dtype(out_dtype).itemsize
    est_vmem = 2 * (block_m * K * in_item       # x tile
                    + K * block_n * in_item     # weight tile
                    + block_n * 4               # bias tile
                    + block_m * block_n * out_item)  # output tile
    vmem_limit = int(min(max(2 * est_vmem, 32 * 1024 * 1024), 48 * 1024 * 1024))

    y_pad = pl.pallas_call(
        _dense_relu_kernel,
        out_shape=jax.ShapeDtypeStruct((M_pad, N_pad), out_dtype),
        grid=grid,
        in_specs=[
            pl.BlockSpec((block_m, K), lambda i, j: (i, 0)),   # x tile
            pl.BlockSpec((K, block_n), lambda i, j: (0, j)),   # weight N-tile
            pl.BlockSpec((1, block_n), lambda i, j: (0, j)),   # bias N-tile
        ],
        out_specs=pl.BlockSpec((block_m, block_n), lambda i, j: (i, j)),
        compiler_params=pltpu.CompilerParams(
            dimension_semantics=("parallel", "parallel"),
            vmem_limit_bytes=vmem_limit,
        ),
    )(x_p, w_p, b_p)

    return y_pad[:M, :N]


if __name__ == "__main__":
    # Module config: Dense(in_channels=32, out_channels=64, activition_type='ReLU')
    batch = 8
    in_channels = 32
    out_channels = 64

    key = jax.random.PRNGKey(0)
    kx, kw, kb = jax.random.split(key, 3)

    x = jax.random.normal(kx, (batch, in_channels), dtype=jnp.float32)
    # nn.Linear weight layout: (out_features, in_features)
    w = jax.random.normal(kw, (out_channels, in_channels), dtype=jnp.float32) * 0.05
    b = jax.random.normal(kb, (out_channels,), dtype=jnp.float32) * 0.05

    y = dense_relu(x, w, b)
    jax.block_until_ready(y)

    # References: (a) bf16-operand / f32-accumulate (same math as the kernel),
    #             (b) plain f32 nn.Linear + ReLU semantics (loose tolerance).
    y_ref_bf16 = jnp.maximum(
        jnp.dot(x.astype(jnp.bfloat16), jnp.transpose(w).astype(jnp.bfloat16),
                preferred_element_type=jnp.float32) + b, 0.0)
    y_ref_f32 = jnp.maximum(x @ w.T + b, 0.0)

    assert y.shape == (batch, out_channels)
    assert jnp.allclose(y, y_ref_bf16, atol=2e-3, rtol=2e-3), "mismatch vs bf16 reference"
    assert jnp.allclose(y, y_ref_f32, atol=2e-2, rtol=2e-2), "mismatch vs f32 reference"

    print("KERNEL_OK")
</pallas_src>

<mosaic_0001>
module attributes {stable_mosaic.version = 11 : i64} {
  func.func @_dense_relu_kernel(%arg0: i32, %arg1: i32, %arg2: memref<8x32xbf16, #tpu.memory_space<vmem>>, %arg3: memref<32x128xbf16, #tpu.memory_space<vmem>>, %arg4: memref<1x128xf32, #tpu.memory_space<vmem>>, %arg5: memref<8x128xf32, #tpu.memory_space<vmem>>) attributes {dimension_semantics = [#tpu.dimension_semantics<parallel>, #tpu.dimension_semantics<parallel>], iteration_bounds = array<i64: 1, 1>, scalar_prefetch = 0 : i64, scratch_operands = 0 : i64, tpu.core_type = #tpu.core_type<tc>, window_params = [{transform_indices = @transform_0, window_bounds = array<i64: 8, 32>}, {transform_indices = @transform_1, window_bounds = array<i64: 32, 128>}, {transform_indices = @transform_2, window_bounds = array<i64: 1, 128>}, {transform_indices = @transform_3, window_bounds = array<i64: 8, 128>}]} {
    %c0 = arith.constant 0 : index
    %c0_0 = arith.constant 0 : index
    %0 = vector.load %arg2[%c0, %c0_0] : memref<8x32xbf16, #tpu.memory_space<vmem>>, vector<8x32xbf16>
    %c0_1 = arith.constant 0 : index
    %c0_2 = arith.constant 0 : index
    %1 = vector.load %arg3[%c0_1, %c0_2] : memref<32x128xbf16, #tpu.memory_space<vmem>>, vector<32x128xbf16>
    %cst = arith.constant dense<0.000000e+00> : vector<8x128xf32>
    %2 = tpu.matmul %0, %1, %cst {dimension_numbers = #tpu.dot_dimension_numbers<[1], [0], [0], [1], [0, 0, 1, 1], [], []>} : vector<8x32xbf16>, vector<32x128xbf16>, vector<8x128xf32> -> vector<8x128xf32>
    %c0_3 = arith.constant 0 : index
    %c0_4 = arith.constant 0 : index
    %3 = vector.load %arg4[%c0_3, %c0_4] : memref<1x128xf32, #tpu.memory_space<vmem>>, vector<1x128xf32>
    %4 = vector.broadcast %3 : vector<1x128xf32> to vector<8x128xf32>
    %5 = arith.addf %2, %4 : vector<8x128xf32>
    %cst_5 = arith.constant 0.000000e+00 : f32
    %6 = vector.broadcast %cst_5 : f32 to vector<8x128xf32>
    %7 = arith.maximumf %5, %6 : vector<8x128xf32>
    %c0_6 = arith.constant 0 : index
    %c0_7 = arith.constant 0 : index
    %8 = vector.load %arg5[%c0_6, %c0_7] : memref<8x128xf32, #tpu.memory_space<vmem>>, vector<8x128xf32>
    tpu.vector_store %arg5[%c0_6, %c0_7], %7 {strides = array<i32>} : memref<8x128xf32, #tpu.memory_space<vmem>>, vector<8x128xf32>,
    return
  }
  func.func @transform_0(%arg0: i32, %arg1: i32) -> (i32, i32) {
    %c0_i32 = arith.constant 0 : i32
    %c0_i32_0 = arith.constant 0 : i32
    return %arg0, %c0_i32 : i32, i32
  }
  func.func @transform_1(%arg0: i32, %arg1: i32) -> (i32, i32) {
    %c0_i32 = arith.constant 0 : i32
    %c0_i32_0 = arith.constant 0 : i32
    return %c0_i32, %arg1 : i32, i32
  }
  func.func @transform_2(%arg0: i32, %arg1: i32) -> (i32, i32) {
    %c0_i32 = arith.constant 0 : i32
    %c0_i32_0 = arith.constant 0 : i32
    return %c0_i32, %arg1 : i32, i32
  }
  func.func @transform_3(%arg0: i32, %arg1: i32) -> (i32, i32) {
    %c0_i32 = arith.constant 0 : i32
    return %arg0, %arg1 : i32, i32
  }
}

</mosaic_0001>

<llo_original>
// kernel: dense_relu.1
$region0: #{dense_relu.1}
  #allocation0 [shape = 'u32[]', space=smem, size = 0x4, offset = 0x4, fixed_abs, tag = 'smem constant byte address 0x4 - core index']
  #allocation1 [shape = 'u32[144,128]{1,0:T(1,128)}', space=vmem, size = 0x12000, scoped, tag = 'internal scratch']
  %s0 = inlined_call_operand.vmem [shape: bf16[8,32], index: 0, kind: input, shape index: {}]
  %s1 = inlined_call_operand.vmem [shape: bf16[32,128], index: 1, kind: input, shape index: {}]
  %s2 = inlined_call_operand.vmem [shape: f32[1,128], index: 2, kind: input, shape index: {}]
  %s3 = inlined_call_operand.hbm [shape: f32[8,128], index: 3, kind: output, shape index: {}]
  %s4 = sld [smem:[#allocation0]]
  $region22: #{dense_relu.1} parent=0
    _
  %s6 = ssub.s32 1, %s4
  %s7 = scalar_select 0, %s6, %s4
  $region1: #{dense_relu.1} parent=0
    #allocation2 [shape = 'u8[4096]{0}', space=vmem, size = 0x1000, scoped, tag = 'output window, operand 0, single buffered']
    #allocation3 [shape = 's32[1]{0}', space=sflag, size = 0x4, scoped, tag = 'scoped memory for dense_relu.1']
    %8 = vsyncpa [#allocation3], 0
    // Predicated region
    $region2: #{dense_relu.1} parent=1 // pred_check
      _
    $region3: #{dense_relu.1} parent=1 // pred_check_branch
      %10 = sbr.rel (0) target = $region5
    $region4: #{dense_relu.1} parent=1 // pred_region
      _
    $region5: #{dense_relu.1} parent=1 // pred_fallthru
      _
    // Predicated region
    $region6: #{dense_relu.1} parent=1 // pred_check
      _
    $region7: #{dense_relu.1} parent=1 // pred_check_branch
      %12 = sbr.rel (0) target = $region9
    $region8: #{dense_relu.1} parent=1 // pred_region
      _
    $region9: #{dense_relu.1} parent=1 // pred_fallthru
      _
    // Predicated region
    $region10: #{dense_relu.1} parent=1 // pred_check
      _
    $region11: #{dense_relu.1} parent=1 // pred_check_branch
      %14 = sbr.rel (0) target = $region13
    $region12: #{dense_relu.1} parent=1 // pred_region
      _
    $region13: #{dense_relu.1} parent=1 // pred_fallthru
      _
    %v16 = vld [vmem:[%s0] sm:$0xf]
    %v17 = vld [vmem:[%s1] sm:$0xf]
    %v18 = vld [vmem:[%s1 + $0x4] sm:$0xf]
    %v19 = vld [vmem:[%s1 + $0x8] sm:$0xf]
    %v20 = vld [vmem:[%s1 + $0xc] sm:$0xf]
    %v21 = vld [vmem:[%s2] sm:$0x1]
    %v23 = vlaneseq
    %v24 = vshrl.u32 %v23, 7
    %v25 = vsub.s32 0, %v24
    %v26 = vrot.slane %v21, %v25
    %v32 = vunpack.c.l.b16 %v17
    %v33 = vunpack.c.l.b16 %v18
    %v34 = vunpack.c.l.b16 %v19
    %v35 = vunpack.c.l.b16 %v20
    %v36 = vpack.c.b16 %v33, %v32
    %v37 = vpack.c.b16 %v35, %v34
    %vm40 = vcmask 261120
    %v42 = vsel %vm40, %v16, 0
    %44 = vmatprep.subr.bf16.mxu0 0
    %45 = vmatpush1.bf16.msra.mxu0 0
    %46 = vmatprep.subr.bf16.mxu0 0
    %47 = vmatpush1.bf16.msra.mxu0 0
    %48 = vmatprep.subr.bf16.mxu0 0
    %49 = vmatpush1.bf16.msra.mxu0 0
    %50 = vmatprep.subr.bf16.mxu0 0
    %51 = vmatpush1.bf16.msra.mxu0 0
    %52 = vmatprep.subr.bf16.mxu0 0
    %53 = vmatpush1.bf16.msra.mxu0 0
    %54 = vmatprep.subr.bf16.mxu0 0
    %55 = vmatpush1.bf16.msra.mxu0 0
    %56 = vmatprep.subr.bf16.mxu0 0
    %57 = vmatpush1.bf16.msra.mxu0 %v37
    %58 = vmatprep.subr.bf16.mxu0 0
    %59 = vmatpush1.bf16.msra.mxu0 %v36
    %60 = vmatprep.subr.bf16.mxu0 0
    %61 = vmatpush2.bf16.msra.mxu0 0
    %62 = vmatprep.subr.bf16.mxu0 0
    %63 = vmatpush2.bf16.msra.mxu0 0
    %64 = vmatprep.subr.bf16.mxu0 0
    %65 = vmatpush2.bf16.msra.mxu0 0
    %66 = vmatprep.subr.bf16.mxu0 0
    %67 = vmatpush2.bf16.msra.mxu0 0
    %68 = vmatprep.subr.bf16.mxu0 0
    %69 = vmatpush2.bf16.msra.mxu0 0
    %70 = vmatprep.subr.bf16.mxu0 0
    %71 = vmatpush2.bf16.msra.mxu0 0
    %72 = vmatprep.subr.bf16.mxu0 0
    %73 = vmatpush2.bf16.msra.mxu0 0
    %74 = vmatprep.subr.bf16.mxu0 0
    %75 = vmatpush2.bf16.msra.mxu0 0
    %76 = vmatprep.mubr.bf16.mxu0 0
    %77 = vmatmul.mubr.bf16.gmra.mxu0 %v42
    %v78 = vpop.f32.mrf.mxu0
    %v79 = vadd.f32 %v26, %v78
    %v80 = vpop.f32.mrf.mxu0
    %v81 = vpop.f32.mrf.mxu0
    %v82 = vpop.f32.mrf.mxu0
    %83 = vdwg.mxu0
    %v84 = vmax.f32 %v79, 0.0
    %85 = vst [vmem:[#allocation2] sm:$0xff] %v84
    // Predicated region
    $region14: #{dense_relu.1} parent=1 // pred_check
      _
    $region15: #{dense_relu.1} parent=1 // pred_check_branch
      %87 = sbr.rel (0) target = $region17
    $region16: #{dense_relu.1} parent=1 // pred_region
      %s89 = ssub.s32 128, 128
      %90 = vsyncadd [#allocation3], %s89
      %s92 = sshll.u32 [#allocation2], 4
      %s93 = int_to_ptr.vmem [resolvable:$true] %s92
      %95 = dma.vmem_to_hbm [thread:$0]  %s93, 128, %s3, [#allocation3]
    $region17: #{dense_relu.1} parent=1 // pred_fallthru
      _
    // Predicated region
    $region18: #{dense_relu.1} parent=1 // pred_check
      _
    $region19: #{dense_relu.1} parent=1 // pred_check_branch
      %97 = sbr.rel (0) target = $region21
    $region20: #{dense_relu.1} parent=1 // pred_region
      %98 = dma.done [#allocation3], 128
    $region21: #{dense_relu.1} parent=1 // pred_fallthru
      _
    %99 = vsyncpa [#allocation3], 1

</llo_original>
